<compile_context>
chip_gen: v6e
topology: v6e:2x2x1
jax: 0.10.0
libtpu: 0.0.40
codegen_flags: <defaults>
</compile_context>

<pallas_src>
import functools

import jax
import jax.numpy as jnp
from jax.experimental import pallas as pl
from jax.experimental.pallas import tpu as pltpu


_LANE = 128
_SUBLANE = 8
_VMEM_BUDGET = 40 * 1024 * 1024      # conservative: fits v7x 64 MiB physical
_W_RESIDENT_MAX = 12 * 1024 * 1024   # keep full W resident (~24 MiB w/ 2 bufs)
_SMALL_FALLBACK_ELEMS = 1 << 14      # tiny problems: plain XLA dot is faster


def _round_up(v, m):
    return ((v + m - 1) // m) * m


# ---------------------------------------------------------------------------
# Kernels
# ---------------------------------------------------------------------------
def _linear_kernel(x_ref, w_ref, b_ref, o_ref):
    # Single K block: one MXU matmul + broadcast bias, lane-dense store.
    o_ref[...] = (
        jnp.dot(x_ref[...], w_ref[...], preferred_element_type=jnp.float32)
        + b_ref[...]
    ).astype(o_ref.dtype)


def _linear_kernel_ktiled(x_ref, w_ref, b_ref, o_ref):
    # Grid = (row_blocks, k_blocks); K is the last ("arbitrary") axis.  The
    # f32 output block is resident across K, so accumulate straight into it
    # (no separate scratch).  Bias is folded into the k == 0 init step.
    k = pl.program_id(1)
    part = jnp.dot(x_ref[...], w_ref[...], preferred_element_type=jnp.float32)

    @pl.when(k == 0)
    def _():
        o_ref[...] = b_ref[...] + part

    @pl.when(k > 0)
    def _():
        o_ref[...] += part


# ---------------------------------------------------------------------------
# Static planning / one-time weight prep
# ---------------------------------------------------------------------------
def _plan_k_out(latent, lower, tk_max, w_resident_max):
    """Static K / output-padding plan (depends only on the layer shape)."""
    # Lane-dense output; pad to 256 when lower_dim > 128 so each MXU pass
    # fills the 256-wide array on v6e/v7x (128 is already full width on v5e).
    out_pad = _round_up(lower, 256) if lower > _LANE else _round_up(lower, _LANE)
    w_bytes = latent * out_pad * 4
    if w_bytes <= w_resident_max:
        # Full-K weight block + constant index_map: DMA'd once, resident
        # across all row blocks, no K grid axis.
        tk_eff, k_pad = latent, latent
    else:
        tk_eff = max(_LANE, (min(tk_max, latent) // _LANE) * _LANE)
        k_pad = _round_up(latent, tk_eff)
    return out_pad, tk_eff, k_pad


def _prep_params(w, b, *, tk_max=1024, w_resident_max=_W_RESIDENT_MAX):
    """One-time weight prep (hoisted out of the per-call hot path):
    transpose W to [K, out] and zero-pad K / out; pad bias to [1, out_pad]."""
    lower, latent = w.shape
    out_pad, tk_eff, k_pad = _plan_k_out(latent, lower, tk_max, w_resident_max)
    w_p = jnp.pad(
        w.T.astype(jnp.float32), ((0, k_pad - latent), (0, out_pad - lower))
    )
    b_p = jnp.pad(
        b.astype(jnp.float32).reshape(1, lower), ((0, 0), (0, out_pad - lower))
    )
    return w_p, b_p, tk_eff


def _choose_tm(n, tm_max):
    """Adaptive row tile: big tiles, bounded padding waste, >=2 row blocks for
    medium/large N (v7x megacore)."""
    n8 = _round_up(n, _SUBLANE)
    if n8 <= tm_max:
        if n8 >= 512:
            tm = _round_up((n8 + 1) // 2, _SUBLANE)   # 2 blocks -> both v7x TCs
            return tm, 2 * tm
        return n8, n8
    cands = [c for c in (1024, 768, 512, 384, 256, 128, 64, 32, 16, 8)
             if c <= tm_max]
    if not cands:
        cands = [_SUBLANE]
    for tm in cands:
        n_pad = _round_up(n, tm)
        if n_pad - n <= max(tm // 8, _SUBLANE):
            return tm, n_pad
    tm = min(cands, key=lambda t: (_round_up(n, t), -t))
    return tm, _round_up(n, tm)


# ---------------------------------------------------------------------------
# Forward
# ---------------------------------------------------------------------------
@functools.partial(
    jax.jit, static_argnames=("lower", "tk_eff", "tm_max", "force_pallas")
)
def projection_head_forward(x, w_p, b_p, *, lower, tk_eff, tm_max=1024,
                            force_pallas=False):
    """out = x @ W.T + b, with W/b already prepped by _prep_params.

    x: [N, latent_dim] f32.  w_p: [k_pad, out_pad].  b_p: [1, out_pad].
    """
    n, latent = x.shape
    k_pad, out_pad = w_p.shape
    assert k_pad >= latent and k_pad % tk_eff == 0
    assert tk_eff == k_pad or tk_eff % _LANE == 0, "tk must be a multiple of 128"

    x = x.astype(jnp.float32)

    # Tiny problems: launch/padding overhead dwarfs the math -> fused XLA dot.
    if not force_pallas and n * latent * lower <= _SMALL_FALLBACK_ELEMS:
        return x @ w_p[:latent, :lower] + b_p[0, :lower]

    tm, n_pad = _choose_tm(n, tm_max)
    k_tiled = tk_eff != k_pad
    wk = tk_eff if k_tiled else k_pad   # K extent of the W block
    xk = tk_eff if k_tiled else k_pad   # K extent of the x block

    def footprint(tm_):
        # double-buffered x, W, bias, out (f32)
        return 4 * (2 * tm_ * xk + 2 * wk * out_pad + 2 * out_pad
                    + 2 * tm_ * out_pad)

    while footprint(tm) > _VMEM_BUDGET and tm > _SUBLANE:
        tm = max(_SUBLANE, _round_up(tm // 2, _SUBLANE))
        n_pad = _round_up(n, tm)

    if n_pad != n or k_pad != latent:
        x_p = jnp.pad(x, ((0, n_pad - n), (0, k_pad - latent)))
    else:
        x_p = x

    row_blocks = n_pad // tm
    vmem_limit = int(min(56 * 2 ** 20, max(2 * footprint(tm), 32 * 2 ** 20)))

    if not k_tiled:
        out = pl.pallas_call(
            _linear_kernel,
            out_shape=jax.ShapeDtypeStruct((n_pad, out_pad), jnp.float32),
            grid=(row_blocks,),
            in_specs=[
                pl.BlockSpec((tm, k_pad), lambda i: (i, 0)),
                # Constant index_map: weight DMA'd once, resident across rows.
                pl.BlockSpec((k_pad, out_pad), lambda i: (0, 0)),
                pl.BlockSpec((1, out_pad), lambda i: (0, 0)),
            ],
            out_specs=pl.BlockSpec((tm, out_pad), lambda i: (i, 0)),
            compiler_params=pltpu.CompilerParams(
                dimension_semantics=("parallel",),
                vmem_limit_bytes=vmem_limit,
            ),
            cost_estimate=pl.CostEstimate(
                flops=2 * n_pad * k_pad * out_pad,
                transcendentals=0,
                bytes_accessed=4 * (n_pad * k_pad + k_pad * out_pad + out_pad
                                    + n_pad * out_pad),
            ),
        )(x_p, w_p, b_p)
    else:
        # Only taken when W does not fit VMEM; W is then necessarily
        # re-streamed once per row block (counted in bytes_accessed).
        out = pl.pallas_call(
            _linear_kernel_ktiled,
            out_shape=jax.ShapeDtypeStruct((n_pad, out_pad), jnp.float32),
            grid=(row_blocks, k_pad // tk_eff),
            in_specs=[
                pl.BlockSpec((tm, tk_eff), lambda i, kk: (i, kk)),
                pl.BlockSpec((tk_eff, out_pad), lambda i, kk: (kk, 0)),
                pl.BlockSpec((1, out_pad), lambda i, kk: (0, 0)),
            ],
            out_specs=pl.BlockSpec((tm, out_pad), lambda i, kk: (i, 0)),
            compiler_params=pltpu.CompilerParams(
                dimension_semantics=("parallel", "arbitrary"),
                vmem_limit_bytes=vmem_limit,
            ),
            cost_estimate=pl.CostEstimate(
                flops=2 * n_pad * k_pad * out_pad,
                transcendentals=0,
                bytes_accessed=4 * (n_pad * k_pad
                                    + row_blocks * k_pad * out_pad
                                    + out_pad + n_pad * out_pad),
            ),
        )(x_p, w_p, b_p)

    return out[:n, :lower]


def projection_head(x, w, b, *, tm_max=1024, tk_max=1024,
                    w_resident_max=_W_RESIDENT_MAX, force_pallas=False):
    """Functional one-shot form: preps W/b then calls the Pallas forward."""
    w_p, b_p, tk_eff = _prep_params(w, b, tk_max=tk_max,
                                    w_resident_max=w_resident_max)
    return projection_head_forward(x, w_p, b_p, lower=w.shape[0],
                                   tk_eff=tk_eff, tm_max=tm_max,
                                   force_pallas=force_pallas)


class ProjectionHead:
    """JAX/Pallas port of the PyTorch Projection_head module."""

    def __init__(self, latent_dim, lower_dim, key, *, tm_max=1024, tk_max=1024):
        self.latent_dim = latent_dim
        self.lower_dim = lower_dim
        self.tm_max = tm_max
        kw, kb = jax.random.split(key)
        bound = 1.0 / (latent_dim ** 0.5)  # torch.nn.Linear default init
        self.w = jax.random.uniform(
            kw, (lower_dim, latent_dim), jnp.float32, -bound, bound
        )
        self.b = jax.random.uniform(kb, (lower_dim,), jnp.float32, -bound, bound)
        # Hoist weight transpose + padding out of the per-call hot path.
        self.w_prepped, self.b_prepped, self.tk_eff = _prep_params(
            self.w, self.b, tk_max=tk_max
        )
        # TODO(synk): optional bf16 storage of x/W (f32 MXU accumulation) would
        # halve HBM traffic on v6e/v7x but changes numerics vs. the f32 module.

    def __call__(self, x, *, force_pallas=False):
        return projection_head_forward(
            x, self.w_prepped, self.b_prepped, lower=self.lower_dim,
            tk_eff=self.tk_eff, tm_max=self.tm_max, force_pallas=force_pallas
        )


if __name__ == "__main__":
    key = jax.random.PRNGKey(0)
    k_param, k_rest = jax.random.split(key)

    # --- demo shapes matching the module (small) -------------------------
    latent_dim, lower_dim, batch = 32, 16, 8
    model = ProjectionHead(latent_dim, lower_dim, k_param)
    kx1, k_rest = jax.random.split(k_rest)
    x = jax.random.normal(kx1, (batch, latent_dim), dtype=jnp.float32)

    out = jax.block_until_ready(model(x, force_pallas=True))
    ref = x @ model.w.T + model.b
    assert out.shape == (batch, lower_dim)
    assert jnp.allclose(out, ref, atol=1e-5, rtol=1e-5)

    # --- exercise multi-row-block + K-tiled accumulator path -------------
    n2, k2, l2 = 24, 256, 16
    kw2, kb2, kx2, k_rest = jax.random.split(k_rest, 4)
    w2 = jax.random.normal(kw2, (l2, k2), dtype=jnp.float32) * 0.05
    b2 = jax.random.normal(kb2, (l2,), dtype=jnp.float32) * 0.05
    x2 = jax.random.normal(kx2, (n2, k2), dtype=jnp.float32)
    out2 = jax.block_until_ready(
        projection_head(x2, w2, b2, tm_max=8, tk_max=128,
                        w_resident_max=0, force_pallas=True)
    )
    ref2 = x2 @ w2.T + b2
    assert out2.shape == (n2, l2)
    assert jnp.allclose(out2, ref2, atol=1e-4, rtol=1e-4)

    # --- exercise adaptive tm / two row blocks / non-128 lower_dim -------
    n3, k3, l3 = 520, 64, 40
    kw3, kb3, kx3 = jax.random.split(k_rest, 3)
    w3 = jax.random.normal(kw3, (l3, k3), dtype=jnp.float32) * 0.05
    b3 = jax.random.normal(kb3, (l3,), dtype=jnp.float32) * 0.05
    x3 = jax.random.normal(kx3, (n3, k3), dtype=jnp.float32)
    out3 = jax.block_until_ready(projection_head(x3, w3, b3, force_pallas=True))
    ref3 = x3 @ w3.T + b3
    assert out3.shape == (n3, l3)
    assert jnp.allclose(out3, ref3, atol=1e-4, rtol=1e-4)

    print("KERNEL_OK")
</pallas_src>

<mosaic_0001>
module attributes {stable_mosaic.version = 11 : i64} {
  func.func @_linear_kernel(%arg0: i32, %arg1: memref<8x32xf32, #tpu.memory_space<vmem>>, %arg2: memref<32x128xf32, #tpu.memory_space<vmem>>, %arg3: memref<1x128xf32, #tpu.memory_space<vmem>>, %arg4: memref<8x128xf32, #tpu.memory_space<vmem>>) attributes {dimension_semantics = [#tpu.dimension_semantics<parallel>], iteration_bounds = array<i64: 1>, scalar_prefetch = 0 : i64, scratch_operands = 0 : i64, tpu.core_type = #tpu.core_type<tc>, window_params = [{transform_indices = @transform_0, window_bounds = array<i64: 8, 32>}, {pipeline_mode = #tpu.pipeline_mode<synchronous>, transform_indices = @transform_1, window_bounds = array<i64: 32, 128>}, {pipeline_mode = #tpu.pipeline_mode<synchronous>, transform_indices = @transform_2, window_bounds = array<i64: 1, 128>}, {transform_indices = @transform_3, window_bounds = array<i64: 8, 128>}]} {
    %c0 = arith.constant 0 : index
    %c0_0 = arith.constant 0 : index
    %0 = vector.load %arg1[%c0, %c0_0] : memref<8x32xf32, #tpu.memory_space<vmem>>, vector<8x32xf32>
    %c0_1 = arith.constant 0 : index
    %c0_2 = arith.constant 0 : index
    %1 = vector.load %arg2[%c0_1, %c0_2] : memref<32x128xf32, #tpu.memory_space<vmem>>, vector<32x128xf32>
    %cst = arith.constant dense<0.000000e+00> : vector<8x128xf32>
    %2 = tpu.matmul %0, %1, %cst {dimension_numbers = #tpu.dot_dimension_numbers<[1], [0], [0], [1], [0, 0, 1, 1], [], []>} : vector<8x32xf32>, vector<32x128xf32>, vector<8x128xf32> -> vector<8x128xf32>
    %c0_3 = arith.constant 0 : index
    %c0_4 = arith.constant 0 : index
    %3 = vector.load %arg3[%c0_3, %c0_4] : memref<1x128xf32, #tpu.memory_space<vmem>>, vector<1x128xf32>
    %4 = vector.broadcast %3 : vector<1x128xf32> to vector<8x128xf32>
    %5 = arith.addf %2, %4 : vector<8x128xf32>
    %c0_5 = arith.constant 0 : index
    %c0_6 = arith.constant 0 : index
    %6 = vector.load %arg4[%c0_5, %c0_6] : memref<8x128xf32, #tpu.memory_space<vmem>>, vector<8x128xf32>
    tpu.vector_store %arg4[%c0_5, %c0_6], %5 {strides = array<i32>} : memref<8x128xf32, #tpu.memory_space<vmem>>, vector<8x128xf32>,
    return
  }
  func.func @transform_0(%arg0: i32) -> (i32, i32) {
    %c0_i32 = arith.constant 0 : i32
    %c0_i32_0 = arith.constant 0 : i32
    return %arg0, %c0_i32 : i32, i32
  }
  func.func @transform_1(%arg0: i32) -> (i32, i32) {
    %c0_i32 = arith.constant 0 : i32
    %c0_i32_0 = arith.constant 0 : i32
    %c0_i32_1 = arith.constant 0 : i32
    return %c0_i32, %c0_i32_0 : i32, i32
  }
  func.func @transform_2(%arg0: i32) -> (i32, i32) {
    %c0_i32 = arith.constant 0 : i32
    %c0_i32_0 = arith.constant 0 : i32
    %c0_i32_1 = arith.constant 0 : i32
    return %c0_i32, %c0_i32_0 : i32, i32
  }
  func.func @transform_3(%arg0: i32) -> (i32, i32) {
    %c0_i32 = arith.constant 0 : i32
    %c0_i32_0 = arith.constant 0 : i32
    return %arg0, %c0_i32 : i32, i32
  }
}

</mosaic_0001>

<llo_original>
// kernel: projection_head_forward.1
$region0: #{projection_head_forward.1}
  #allocation0 [shape = 'u32[]', space=smem, size = 0x4, offset = 0x4, fixed_abs, tag = 'smem constant byte address 0x4 - core index']
  #allocation1 [shape = 'u32[144,128]{1,0:T(1,128)}', space=vmem, size = 0x12000, scoped, tag = 'internal scratch']
  %s0 = inlined_call_operand.hbm [shape: f32[8,32], index: 0, kind: input, shape index: {}]
  %s1 = inlined_call_operand.hbm [shape: f32[32,128], index: 1, kind: input, shape index: {}]
  %s2 = inlined_call_operand.vmem [shape: f32[1,128], index: 2, kind: input, shape index: {}]
  %s3 = inlined_call_operand.hbm [shape: f32[8,128], index: 3, kind: output, shape index: {}]
  %s4 = sld [smem:[#allocation0]]
  $region30: #{projection_head_forward.1} parent=0
    _
  %s6 = ssub.s32 1, %s4
  %s7 = scalar_select 0, %s6, %s4
  $region1: #{projection_head_forward.1} parent=0
    #allocation2 [shape = 'u8[4096]{0}', space=vmem, size = 0x1000, scoped, tag = 'input window, operand 0, single buffered']
    #allocation3 [shape = 's32[1]{0}', space=sflag, size = 0x4, scoped, tag = 'scoped memory for projection_head_forward.1']
    #allocation4 [shape = 's32[1]{0}', space=sflag, size = 0x4, scoped, tag = 'scoped memory for projection_head_forward.1']
    #allocation5 [shape = 'u8[16384]{0}', space=vmem, size = 0x4000, scoped, tag = 'input window, operand 1, single buffered']
    #allocation6 [shape = 's32[1]{0}', space=sflag, size = 0x4, scoped, tag = 'scoped memory for projection_head_forward.1']
    #allocation7 [shape = 'u8[4096]{0}', space=vmem, size = 0x1000, scoped, tag = 'output window, operand 0, single buffered']
    %8 = vsyncpa [#allocation3], 0
    %9 = vsyncpa [#allocation6], 0
    %10 = vsyncpa [#allocation4], 0
    // Predicated region
    $region2: #{projection_head_forward.1} parent=1 // pred_check
      _
    $region3: #{projection_head_forward.1} parent=1 // pred_check_branch
      %12 = sbr.rel (0) target = $region5
    $region4: #{projection_head_forward.1} parent=1 // pred_region
      %s14 = ssub.s32 128, 128
      %15 = vsyncadd [#allocation3], %s14
      %s17 = sshll.u32 [#allocation2], 4
      %s18 = int_to_ptr.vmem [resolvable:$true] %s17
      %20 = dma.hbm_to_vmem [thread:$0]  %s0, 128, %s18, [#allocation3]
    $region5: #{projection_head_forward.1} parent=1 // pred_fallthru
      _
    // Predicated region
    $region6: #{projection_head_forward.1} parent=1 // pred_check
      _
    $region7: #{projection_head_forward.1} parent=1 // pred_check_branch
      %22 = sbr.rel (0) target = $region9
    $region8: #{projection_head_forward.1} parent=1 // pred_region
      %s24 = ssub.s32 512, 512
      %25 = vsyncadd [#allocation6], %s24
      %s26 = sshll.u32 [#allocation5], 4
      %s27 = int_to_ptr.vmem [resolvable:$true] %s26
      %32 = dma.hbm_to_vmem [thread:$0]  %s1, 512, %s27, [#allocation6], 128, 128, 8
    $region9: #{projection_head_forward.1} parent=1 // pred_fallthru
      _
    // Predicated region
    $region10: #{projection_head_forward.1} parent=1 // pred_check
      _
    $region11: #{projection_head_forward.1} parent=1 // pred_check_branch
      %34 = sbr.rel (0) target = $region13
    $region12: #{projection_head_forward.1} parent=1 // pred_region
      _
    $region13: #{projection_head_forward.1} parent=1 // pred_fallthru
      _
    // Predicated region
    $region14: #{projection_head_forward.1} parent=1 // pred_check
      _
    $region15: #{projection_head_forward.1} parent=1 // pred_check_branch
      %36 = sbr.rel (0) target = $region17
    $region16: #{projection_head_forward.1} parent=1 // pred_region
      %37 = dma.done [#allocation3], 128
    $region17: #{projection_head_forward.1} parent=1 // pred_fallthru
      _
    // Predicated region
    $region18: #{projection_head_forward.1} parent=1 // pred_check
      _
    $region19: #{projection_head_forward.1} parent=1 // pred_check_branch
      %39 = sbr.rel (0) target = $region21
    $region20: #{projection_head_forward.1} parent=1 // pred_region
      %40 = dma.done [#allocation6], 512
    $region21: #{projection_head_forward.1} parent=1 // pred_fallthru
      _
    %v41 = vld [vmem:[#allocation2] sm:$0xff]
    %v42 = vld [vmem:[#allocation5] sm:$0xff]
    %v43 = vld [vmem:[#allocation5 + $0x8] sm:$0xff]
    %v44 = vld [vmem:[#allocation5 + $0x10] sm:$0xff]
    %v45 = vld [vmem:[#allocation5 + $0x18] sm:$0xff]
    %v46 = vld [vmem:[%s2] sm:$0x1]
    %v48 = vlaneseq
    %v49 = vshrl.u32 %v48, 7
    %v50 = vsub.s32 0, %v49
    %v51 = vrot.slane %v46, %v50
    %vm53 = vcmask 261120
    %v55 = vsel %vm53, %v41, 0
    %57 = vmatprep.subr.mxu0 0.0
    %58 = vmatpush1.msra.mxu0 0.0
    %59 = vmatprep.subr.mxu0 0.0
    %60 = vmatpush1.msra.mxu0 0.0
    %61 = vmatprep.subr.mxu0 0.0
    %62 = vmatpush1.msra.mxu0 0.0
    %63 = vmatprep.subr.mxu0 0.0
    %64 = vmatpush1.msra.mxu0 0.0
    %65 = vmatprep.subr.mxu0 0.0
    %66 = vmatpush1.msra.mxu0 0.0
    %67 = vmatprep.subr.mxu0 0.0
    %68 = vmatpush1.msra.mxu0 0.0
    %69 = vmatprep.subr.mxu0 0.0
    %70 = vmatpush1.msra.mxu0 0.0
    %71 = vmatprep.subr.mxu0 0.0
    %72 = vmatpush1.msra.mxu0 0.0
    %73 = vmatprep.subr.mxu0 0.0
    %74 = vmatpush1.msra.mxu0 0.0
    %75 = vmatprep.subr.mxu0 0.0
    %76 = vmatpush1.msra.mxu0 0.0
    %77 = vmatprep.subr.mxu0 0.0
    %78 = vmatpush1.msra.mxu0 0.0
    %79 = vmatprep.subr.mxu0 0.0
    %80 = vmatpush1.msra.mxu0 0.0
    %81 = vmatprep.subr.mxu0 0.0
    %82 = vmatpush1.msra.mxu0 %v45
    %83 = vmatprep.subr.mxu0 0.0
    %84 = vmatpush1.msra.mxu0 %v44
    %85 = vmatprep.subr.mxu0 0.0
    %86 = vmatpush1.msra.mxu0 %v43
    %87 = vmatprep.subr.mxu0 0.0
    %88 = vmatpush1.msra.mxu0 %v42
    %89 = vmatprep.subr.mxu0 0.0
    %90 = vmatpush2.msra.mxu0 0.0
    %91 = vmatprep.subr.mxu0 0.0
    %92 = vmatpush2.msra.mxu0 0.0
    %93 = vmatprep.subr.mxu0 0.0
    %94 = vmatpush2.msra.mxu0 0.0
    %95 = vmatprep.subr.mxu0 0.0
    %96 = vmatpush2.msra.mxu0 0.0
    %97 = vmatprep.subr.mxu0 0.0
    %98 = vmatpush2.msra.mxu0 0.0
    %99 = vmatprep.subr.mxu0 0.0
    %100 = vmatpush2.msra.mxu0 0.0
    %101 = vmatprep.subr.mxu0 0.0
    %102 = vmatpush2.msra.mxu0 0.0
    %103 = vmatprep.subr.mxu0 0.0
    %104 = vmatpush2.msra.mxu0 0.0
    %105 = vmatprep.subr.mxu0 0.0
    %106 = vmatpush2.msra.mxu0 0.0
    %107 = vmatprep.subr.mxu0 0.0
    %108 = vmatpush2.msra.mxu0 0.0
    %109 = vmatprep.subr.mxu0 0.0
    %110 = vmatpush2.msra.mxu0 0.0
    %111 = vmatprep.subr.mxu0 0.0
    %112 = vmatpush2.msra.mxu0 0.0
    %113 = vmatprep.subr.mxu0 0.0
    %114 = vmatpush2.msra.mxu0 0.0
    %115 = vmatprep.subr.mxu0 0.0
    %116 = vmatpush2.msra.mxu0 0.0
    %117 = vmatprep.subr.mxu0 0.0
    %118 = vmatpush2.msra.mxu0 0.0
    %119 = vmatprep.subr.mxu0 0.0
    %120 = vmatpush2.msra.mxu0 0.0
    %121 = vmatprep.mubr.f32.mxu0 0.0
    %122 = vmatmul.mubr.f32.gmra.mxu0 %v55
    %v123 = vpop.f32.mrf.mxu0
    %v124 = vadd.f32 %v51, %v123
    %v125 = vpop.f32.mrf.mxu0
    %126 = vdwg.mxu0
    %127 = vst [vmem:[#allocation7] sm:$0xff] %v124
    // Predicated region
    $region22: #{projection_head_forward.1} parent=1 // pred_check
      _
    $region23: #{projection_head_forward.1} parent=1 // pred_check_branch
      %129 = sbr.rel (0) target = $region25
    $region24: #{projection_head_forward.1} parent=1 // pred_region
      %s131 = ssub.s32 128, 128
      %132 = vsyncadd [#allocation4], %s131
      %s134 = sshll.u32 [#allocation7], 4
      %s135 = int_to_ptr.vmem [resolvable:$true] %s134
      %137 = dma.vmem_to_hbm [thread:$0]  %s135, 128, %s3, [#allocation4]
    $region25: #{projection_head_forward.1} parent=1 // pred_fallthru
      _
    // Predicated region
    $region26: #{projection_head_forward.1} parent=1 // pred_check
      _
    $region27: #{projection_head_forward.1} parent=1 // pred_check_branch
      %139 = sbr.rel (0) target = $region29
    $region28: #{projection_head_forward.1} parent=1 // pred_region
      %140 = dma.done [#allocation4], 128
    $region29: #{projection_head_forward.1} parent=1 // pred_fallthru
      _
    %141 = vsyncpa [#allocation3], 1
    %142 = vsyncpa [#allocation6], 1
    %143 = vsyncpa [#allocation4], 1

</llo_original>
